<compile_context>
chip_gen: v6e
topology: v6e:2x2x1
jax: 0.10.0
libtpu: 0.0.40
codegen_flags: <defaults>
</compile_context>

<pallas_src>
import functools

import jax
import jax.numpy as jnp
from jax.experimental import pallas as pl
from jax.experimental.pallas import tpu as pltpu


_LANE = 128

_ACTIVATIONS = {
    "relu": lambda y: jnp.maximum(y, 0.0),
    "gelu": functools.partial(jax.nn.gelu, approximate=False),  # nn.GELU default
    "tanh": jnp.tanh,
    "sigmoid": jax.nn.sigmoid,
    "none": lambda y: y,
}


def _round_up(x, m):
    return ((x + m - 1) // m) * m


# ----------------------------------------------------------------------------
# Kernels
# ----------------------------------------------------------------------------
def _ff_kernel_f32out(x_ref, w_ref, b_ref, o_ref, *, activation, precision):
    """f32 output: accumulate directly into the resident output block."""
    @pl.when(pl.program_id(2) == 0)
    def _():
        o_ref[...] = jnp.zeros_like(o_ref)

    o_ref[...] += jnp.dot(x_ref[...], w_ref[...],
                          preferred_element_type=jnp.float32,
                          precision=precision)

    @pl.when(pl.program_id(2) == pl.num_programs(2) - 1)
    def _():
        o_ref[...] = _ACTIVATIONS[activation](o_ref[...] + b_ref[...])


def _ff_kernel_acc(x_ref, w_ref, b_ref, o_ref, acc_ref, *, activation, precision):
    """Narrow (non-f32) output dtype: f32 VMEM accumulator, cast at the store."""
    @pl.when(pl.program_id(2) == 0)
    def _():
        acc_ref[...] = jnp.zeros_like(acc_ref)

    acc_ref[...] += jnp.dot(x_ref[...], w_ref[...],
                            preferred_element_type=jnp.float32,
                            precision=precision)

    @pl.when(pl.program_id(2) == pl.num_programs(2) - 1)
    def _():
        y = _ACTIVATIONS[activation](acc_ref[...] + b_ref[...])
        o_ref[...] = y.astype(o_ref.dtype)


# ----------------------------------------------------------------------------
# Tile / VMEM selection helpers
# ----------------------------------------------------------------------------
def _pick_divisor_tile(total, desired, granule=_LANE):
    """Largest multiple of `granule` that divides `total` and is <= desired."""
    if total <= desired:
        return total
    best = granule
    t = granule
    while t <= desired:
        if total % t == 0:
            best = t
        t += granule
    return best


def _pick_m_tile(m, desired, granule):
    """Pick tm from a /2 ladder (floor 64) minimizing M-padding waste."""
    mg = _round_up(m, granule)
    if mg <= desired:
        return mg
    floor = max(granule, 64)
    best_tm, best_pad = None, None
    t = desired
    while True:
        tt = max(t, floor)
        pad = _round_up(mg, tt) - mg
        if best_pad is None or pad < best_pad:
            best_tm, best_pad = tt, pad
        if tt == floor:
            break
        t //= 2
    return best_tm


def _vmem_limit_bytes():
    try:
        cap = pltpu.get_tpu_info().vmem_capacity_bytes
    except Exception:
        cap = 64 << 20  # conservative (v7x-sized) fallback
    # v7x: 64 MiB VMEM per TensorCore -> cap scoped limit at 48 MiB.
    # v5e / v6e: 128 MiB physical -> 64 MiB of headroom.
    return (48 << 20) if cap <= (64 << 20) else (64 << 20)


# ----------------------------------------------------------------------------
# Parameter prep (do ONCE at load time, not per forward call)
# ----------------------------------------------------------------------------
def prepare_ff_params(weight, bias=None, *, compute_dtype=jnp.bfloat16):
    """Transpose + cast + lane-pad the FF parameters.

    weight: [n_out, n_in] (PyTorch nn.Linear layout).   bias: [n_out] or None.
    Returns (w_t_padded [Kp, Np], bias_padded [1, Np] f32, n_out) with
    Kp = round_up(n_in, 128), Np = round_up(n_out, 128).
    """
    n_out, n_in = weight.shape
    kp = _round_up(n_in, _LANE)
    np_ = _round_up(n_out, _LANE)
    w_t = weight.T
    if compute_dtype is not None:
        w_t = w_t.astype(compute_dtype)
    if (kp, np_) != (n_in, n_out):
        w_t = jnp.pad(w_t, ((0, kp - n_in), (0, np_ - n_out)))
    if bias is None:
        b = jnp.zeros((1, np_), jnp.float32)
    else:
        b = bias.astype(jnp.float32).reshape(1, n_out)
        if np_ != n_out:
            b = jnp.pad(b, ((0, 0), (0, np_ - n_out)))
    return w_t, b, n_out


# ----------------------------------------------------------------------------
# Forward
# ----------------------------------------------------------------------------
def ff_forward(x, w_t_padded, bias_padded, n_out, *, activation="relu",
               compute_dtype=jnp.bfloat16, out_dtype=None,
               tm=512, tn=512, tk=1024, precision=None):
    """Feed-forward: act(x @ W.T + b); dropout is identity (eval mode).

    x: [..., n_in].  w_t_padded / bias_padded come from prepare_ff_params.
    compute_dtype: matmul-input dtype (bf16 default -> MXU-native on all gens);
                   accumulation is always f32.
    out_dtype: output dtype (default: x's dtype).
    precision: optional lax.Precision for exact-f32 parity (HIGHEST = 3 passes).
    """
    *lead, n_in = x.shape
    M = 1
    for d in lead:
        M *= d
    out_dtype = jnp.dtype(out_dtype if out_dtype is not None else x.dtype)

    if compute_dtype is not None:
        x = x.astype(compute_dtype)

    kp, np_ = w_t_padded.shape
    assert kp == _round_up(n_in, _LANE) and n_in <= kp, \
        "w_t_padded must come from prepare_ff_params for this n_in"

    # Sublane granule for the M axis: 8 for 4-byte inputs, 16 for bf16.
    gm = max(8, 32 // jnp.dtype(x.dtype).itemsize)
    tm = _pick_m_tile(M, tm, gm)
    tn = _pick_divisor_tile(np_, tn)
    tk = _pick_divisor_tile(kp, tk)
    mp = _round_up(M, tm)

    # Keep >= 2 blocks along the parallel (M, N) axes when the shape permits,
    # so both v7x TensorCores get work (harmless elsewhere).
    if (mp // tm) * (np_ // tn) < 2:
        if tn % 256 == 0:
            tn //= 2
        elif tm >= 2 * gm and tm % (2 * gm) == 0:
            tm //= 2
            mp = _round_up(M, tm)

    x2d = x.reshape(M, n_in)
    if (mp, kp) != (M, n_in):  # pad x only when needed (per call)
        x2d = jnp.pad(x2d, ((0, mp - M), (0, kp - n_in)))

    grid = (mp // tm, np_ // tn, kp // tk)

    if out_dtype == jnp.dtype("float32"):
        kernel = functools.partial(_ff_kernel_f32out, activation=activation,
                                   precision=precision)
        scratch = []
    else:
        kernel = functools.partial(_ff_kernel_acc, activation=activation,
                                   precision=precision)
        scratch = [pltpu.VMEM((tm, tn), jnp.float32)]

    n_transc = mp * np_ if activation in ("gelu", "tanh", "sigmoid") else 0
    cost = pl.CostEstimate(
        flops=2 * mp * kp * np_,
        transcendentals=n_transc,
        bytes_accessed=(x2d.size * x2d.dtype.itemsize
                        + w_t_padded.size * w_t_padded.dtype.itemsize
                        + mp * np_ * out_dtype.itemsize
                        + bias_padded.size * 4),
    )

    out = pl.pallas_call(
        kernel,
        out_shape=jax.ShapeDtypeStruct((mp, np_), out_dtype),
        grid_spec=pltpu.PrefetchScalarGridSpec(
            num_scalar_prefetch=0,
            grid=grid,
            in_specs=[
                pl.BlockSpec((tm, tk), lambda i, j, k: (i, k)),
                pl.BlockSpec((tk, tn), lambda i, j, k: (k, j)),
                pl.BlockSpec((1, tn), lambda i, j, k: (0, j)),
            ],
            out_specs=pl.BlockSpec((tm, tn), lambda i, j, k: (i, j)),
            scratch_shapes=scratch,
        ),
        compiler_params=pltpu.CompilerParams(
            dimension_semantics=("parallel", "parallel", "arbitrary"),
            vmem_limit_bytes=_vmem_limit_bytes(),
        ),
        cost_estimate=cost,
    )(x2d, w_t_padded, bias_padded)

    out = out[:M, :n_out]
    return out.reshape(*lead, n_out)


# ----------------------------------------------------------------------------
# Reference + tests
# ----------------------------------------------------------------------------
def _reference(x, weight, bias, activation="relu"):
    y = jnp.einsum("...d,od->...o", x, weight,
                   precision=jax.lax.Precision.HIGHEST) + bias
    return _ACTIVATIONS[activation](y)


if __name__ == "__main__":
    key = jax.random.PRNGKey(0)

    # ---- Case 1: FF(n_in=32, n_out=64), small spec-like shape --------------
    B, S, n_in, n_out = 2, 8, 32, 64
    k1, k2, k3, key = jax.random.split(key, 4)
    x = jax.random.normal(k1, (B, S, n_in), dtype=jnp.float32)
    bound = 1.0 / (n_in ** 0.5)
    weight = jax.random.uniform(k2, (n_out, n_in), minval=-bound, maxval=bound,
                                dtype=jnp.float32)      # PyTorch layout
    bias = jax.random.uniform(k3, (n_out,), minval=-bound, maxval=bound,
                              dtype=jnp.float32)
    w_p, b_p, n_out_ = prepare_ff_params(weight, bias)  # once, at load time

    out = jax.block_until_ready(ff_forward(x, w_p, b_p, n_out_))
    ref = _reference(x, weight, bias)
    assert out.shape == (B, S, n_out)
    assert jnp.allclose(out, ref, atol=2e-2, rtol=2e-2)

    # ---- Case 2: multi-tile grid, bf16 inputs, f32 output (direct acc) -----
    B2, S2, n_in2, n_out2 = 2, 128, 384, 512
    k1, k2, k3, key = jax.random.split(key, 4)
    x2 = jax.random.normal(k1, (B2, S2, n_in2), dtype=jnp.float32)
    bound2 = 1.0 / (n_in2 ** 0.5)
    weight2 = jax.random.uniform(k2, (n_out2, n_in2), minval=-bound2,
                                 maxval=bound2, dtype=jnp.float32)
    bias2 = jax.random.uniform(k3, (n_out2,), minval=-bound2, maxval=bound2,
                               dtype=jnp.float32)
    w_p2, b_p2, n_out2_ = prepare_ff_params(weight2, bias2)
    ref2 = _reference(x2, weight2, bias2)

    out2 = jax.block_until_ready(
        ff_forward(x2, w_p2, b_p2, n_out2_, tk=128))    # K grid axis = 3
    assert out2.shape == (B2, S2, n_out2)
    assert jnp.allclose(out2, ref2, atol=2e-2, rtol=2e-2)

    # ---- Case 3: narrow output dtype (bf16 out -> f32 scratch kernel) ------
    out3 = jax.block_until_ready(
        ff_forward(x2, w_p2, b_p2, n_out2_, tk=128, out_dtype=jnp.bfloat16))
    assert out3.dtype == jnp.bfloat16
    assert jnp.allclose(out3.astype(jnp.float32), ref2, atol=5e-2, rtol=5e-2)

    # ---- Case 4: exact-f32 path (compute_dtype=f32 + Precision.HIGHEST) ----
    w_p4, b_p4, _ = prepare_ff_params(weight2, bias2, compute_dtype=jnp.float32)
    out4 = jax.block_until_ready(
        ff_forward(x2, w_p4, b_p4, n_out2_, compute_dtype=jnp.float32,
                   tk=128, precision=jax.lax.Precision.HIGHEST))
    assert jnp.allclose(out4, ref2, atol=1e-4, rtol=1e-4)

    print("KERNEL_OK")
</pallas_src>

<mosaic_0001>
module attributes {stable_mosaic.version = 11 : i64} {
  func.func @_ff_kernel_f32out(%arg0: i32, %arg1: i32, %arg2: i32, %arg3: memref<16x128xbf16, #tpu.memory_space<vmem>>, %arg4: memref<128x128xbf16, #tpu.memory_space<vmem>>, %arg5: memref<1x128xf32, #tpu.memory_space<vmem>>, %arg6: memref<16x128xf32, #tpu.memory_space<vmem>>) attributes {dimension_semantics = [#tpu.dimension_semantics<parallel>, #tpu.dimension_semantics<parallel>, #tpu.dimension_semantics<arbitrary>], iteration_bounds = array<i64: 1, 1, 1>, scalar_prefetch = 0 : i64, scratch_operands = 0 : i64, tpu.core_type = #tpu.core_type<tc>, window_params = [{transform_indices = @transform_0, window_bounds = array<i64: 16, 128>}, {transform_indices = @transform_1, window_bounds = array<i64: 128, 128>}, {transform_indices = @transform_2, window_bounds = array<i64: 1, 128>}, {transform_indices = @transform_3, window_bounds = array<i64: 16, 128>}]} {
    %c0_i32 = arith.constant 0 : i32
    %0 = arith.cmpi eq, %arg2, %c0_i32 : i32
    %1 = arith.extui %0 : i1 to i32
    %c0_i32_0 = arith.constant 0 : i32
    %2 = arith.cmpi ne, %1, %c0_i32_0 : i32
    scf.if %2 {
      %cst_10 = arith.constant 0.000000e+00 : f32
      %12 = vector.broadcast %cst_10 : f32 to vector<16x128xf32>
      %c0_11 = arith.constant 0 : index
      %c0_12 = arith.constant 0 : index
      %13 = vector.load %arg6[%c0_11, %c0_12] : memref<16x128xf32, #tpu.memory_space<vmem>>, vector<16x128xf32>
      tpu.vector_store %arg6[%c0_11, %c0_12], %12 {strides = array<i32>} : memref<16x128xf32, #tpu.memory_space<vmem>>, vector<16x128xf32>,
    } else {
    }
    %c0 = arith.constant 0 : index
    %c0_1 = arith.constant 0 : index
    %3 = vector.load %arg6[%c0, %c0_1] : memref<16x128xf32, #tpu.memory_space<vmem>>, vector<16x128xf32>
    %c0_2 = arith.constant 0 : index
    %c0_3 = arith.constant 0 : index
    %4 = vector.load %arg3[%c0_2, %c0_3] : memref<16x128xbf16, #tpu.memory_space<vmem>>, vector<16x128xbf16>
    %c0_4 = arith.constant 0 : index
    %c0_5 = arith.constant 0 : index
    %5 = vector.load %arg4[%c0_4, %c0_5] : memref<128x128xbf16, #tpu.memory_space<vmem>>, vector<128x128xbf16>
    %cst = arith.constant dense<0.000000e+00> : vector<16x128xf32>
    %6 = tpu.matmul %4, %5, %cst {dimension_numbers = #tpu.dot_dimension_numbers<[1], [0], [0], [1], [0, 0, 1, 1], [], []>} : vector<16x128xbf16>, vector<128x128xbf16>, vector<16x128xf32> -> vector<16x128xf32>
    %7 = arith.addf %3, %6 : vector<16x128xf32>
    %c0_6 = arith.constant 0 : index
    %c0_7 = arith.constant 0 : index
    %8 = vector.load %arg6[%c0_6, %c0_7] : memref<16x128xf32, #tpu.memory_space<vmem>>, vector<16x128xf32>
    tpu.vector_store %arg6[%c0_6, %c0_7], %7 {strides = array<i32>} : memref<16x128xf32, #tpu.memory_space<vmem>>, vector<16x128xf32>,
    %c0_i32_8 = arith.constant 0 : i32
    %9 = arith.cmpi eq, %arg2, %c0_i32_8 : i32
    %10 = arith.extui %9 : i1 to i32
    %c0_i32_9 = arith.constant 0 : i32
    %11 = arith.cmpi ne, %10, %c0_i32_9 : i32
    scf.if %11 {
      %c0_10 = arith.constant 0 : index
      %c0_11 = arith.constant 0 : index
      %12 = vector.load %arg6[%c0_10, %c0_11] : memref<16x128xf32, #tpu.memory_space<vmem>>, vector<16x128xf32>
      %c0_12 = arith.constant 0 : index
      %c0_13 = arith.constant 0 : index
      %13 = vector.load %arg5[%c0_12, %c0_13] : memref<1x128xf32, #tpu.memory_space<vmem>>, vector<1x128xf32>
      %14 = vector.broadcast %13 : vector<1x128xf32> to vector<16x128xf32>
      %15 = arith.addf %12, %14 : vector<16x128xf32>
      %cst_14 = arith.constant 0.000000e+00 : f32
      %16 = vector.broadcast %cst_14 : f32 to vector<16x128xf32>
      %17 = arith.maximumf %15, %16 : vector<16x128xf32>
      %c0_15 = arith.constant 0 : index
      %c0_16 = arith.constant 0 : index
      %18 = vector.load %arg6[%c0_15, %c0_16] : memref<16x128xf32, #tpu.memory_space<vmem>>, vector<16x128xf32>
      tpu.vector_store %arg6[%c0_15, %c0_16], %17 {strides = array<i32>} : memref<16x128xf32, #tpu.memory_space<vmem>>, vector<16x128xf32>,
    } else {
    }
    return
  }
  func.func @transform_0(%arg0: i32, %arg1: i32, %arg2: i32) -> (i32, i32) {
    %c0_i32 = arith.constant 0 : i32
    return %arg0, %arg2 : i32, i32
  }
  func.func @transform_1(%arg0: i32, %arg1: i32, %arg2: i32) -> (i32, i32) {
    %c0_i32 = arith.constant 0 : i32
    return %arg2, %arg1 : i32, i32
  }
  func.func @transform_2(%arg0: i32, %arg1: i32, %arg2: i32) -> (i32, i32) {
    %c0_i32 = arith.constant 0 : i32
    %c0_i32_0 = arith.constant 0 : i32
    return %c0_i32, %arg1 : i32, i32
  }
  func.func @transform_3(%arg0: i32, %arg1: i32, %arg2: i32) -> (i32, i32) {
    %c0_i32 = arith.constant 0 : i32
    return %arg0, %arg1 : i32, i32
  }
}

</mosaic_0001>

<llo_original>
// kernel: tpu_custom_call.1
$region0: #{tpu_custom_call.1}
  #allocation0 [shape = 'u32[]', space=smem, size = 0x4, offset = 0x4, fixed_abs, tag = 'smem constant byte address 0x4 - core index']
  #allocation1 [shape = 'u32[144,128]{1,0:T(1,128)}', space=vmem, size = 0x12000, scoped, tag = 'internal scratch']
  %s0 = inlined_call_operand.hbm [shape: bf16[16,128], index: 0, kind: input, shape index: {}]
  %s1 = inlined_call_operand.hbm [shape: bf16[128,128], index: 1, kind: input, shape index: {}]
  %s2 = inlined_call_operand.vmem [shape: f32[1,128], index: 2, kind: input, shape index: {}]
  %s3 = inlined_call_operand.hbm [shape: f32[16,128], index: 3, kind: output, shape index: {}]
  %s4 = sld [smem:[#allocation0]]
  $region38: #{tpu_custom_call.1} parent=0
    _
  %s6 = ssub.s32 1, %s4
  %s7 = scalar_select 0, %s6, %s4
  $region1: #{tpu_custom_call.1} parent=0
    #allocation2 [shape = 'u8[4096]{0}', space=vmem, size = 0x1000, scoped, tag = 'input window, operand 0, single buffered']
    #allocation3 [shape = 's32[1]{0}', space=sflag, size = 0x4, scoped, tag = 'scoped memory for tpu_custom_call.1']
    #allocation4 [shape = 's32[1]{0}', space=sflag, size = 0x4, scoped, tag = 'scoped memory for tpu_custom_call.1']
    #allocation5 [shape = 'u8[32768]{0}', space=vmem, size = 0x8000, scoped, tag = 'input window, operand 1, single buffered']
    #allocation6 [shape = 's32[1]{0}', space=sflag, size = 0x4, scoped, tag = 'scoped memory for tpu_custom_call.1']
    #allocation7 [shape = 'u8[8192]{0}', space=vmem, size = 0x2000, scoped, tag = 'output window, operand 0, single buffered']
    %8 = vsyncpa [#allocation3], 0
    %9 = vsyncpa [#allocation6], 0
    %10 = vsyncpa [#allocation4], 0
    // Predicated region
    $region2: #{tpu_custom_call.1} parent=1 // pred_check
      _
    $region3: #{tpu_custom_call.1} parent=1 // pred_check_branch
      %12 = sbr.rel (0) target = $region5
    $region4: #{tpu_custom_call.1} parent=1 // pred_region
      %s14 = ssub.s32 128, 128
      %15 = vsyncadd [#allocation3], %s14
      %s16 = sshll.u32 [#allocation2], 4
      %s17 = int_to_ptr.vmem [resolvable:$true] %s16
      %22 = dma.hbm_to_vmem [thread:$0]  %s0, 128, %s17, [#allocation3], 64, 64, 4
    $region5: #{tpu_custom_call.1} parent=1 // pred_fallthru
      _
    // Predicated region
    $region6: #{tpu_custom_call.1} parent=1 // pred_check
      _
    $region7: #{tpu_custom_call.1} parent=1 // pred_check_branch
      %24 = sbr.rel (0) target = $region9
    $region8: #{tpu_custom_call.1} parent=1 // pred_region
      %s26 = ssub.s32 1024, 1024
      %27 = vsyncadd [#allocation6], %s26
      %s28 = sshll.u32 [#allocation5], 4
      %s29 = int_to_ptr.vmem [resolvable:$true] %s28
      %34 = dma.hbm_to_vmem [thread:$0]  %s1, 1024, %s29, [#allocation6], 64, 64, 4
    $region9: #{tpu_custom_call.1} parent=1 // pred_fallthru
      _
    // Predicated region
    $region10: #{tpu_custom_call.1} parent=1 // pred_check
      _
    $region11: #{tpu_custom_call.1} parent=1 // pred_check_branch
      %36 = sbr.rel (0) target = $region13
    $region12: #{tpu_custom_call.1} parent=1 // pred_region
      _
    $region13: #{tpu_custom_call.1} parent=1 // pred_fallthru
      _
    // Predicated region
    $region14: #{tpu_custom_call.1} parent=1 // pred_check
      _
    $region15: #{tpu_custom_call.1} parent=1 // pred_check_branch
      %38 = sbr.rel (0) target = $region17
    $region16: #{tpu_custom_call.1} parent=1 // pred_region
      %39 = dma.done [#allocation3], 128
    $region17: #{tpu_custom_call.1} parent=1 // pred_fallthru
      _
    // Predicated region
    $region18: #{tpu_custom_call.1} parent=1 // pred_check
      _
    $region19: #{tpu_custom_call.1} parent=1 // pred_check_branch
      %41 = sbr.rel (0) target = $region21
    $region20: #{tpu_custom_call.1} parent=1 // pred_region
      %42 = dma.done [#allocation6], 1024
    $region21: #{tpu_custom_call.1} parent=1 // pred_fallthru
      _
    %p44 = scmp.eq.s32.totalorder 0, 0
    // Predicated region
    $region22: #{tpu_custom_call.1} parent=1 // pred_check
      %p45 = pneg %p44
    $region23: #{tpu_custom_call.1} parent=1 // pred_check_branch
      %47 = sbr.rel (%p45) target = $region25
    $region24: #{tpu_custom_call.1} parent=1 // pred_region
      %48 = vst [vmem:[#allocation7] sm:$0xff] 0.0
      %49 = vst [vmem:[#allocation7 + $0x8] sm:$0xff] 0.0
    $region25: #{tpu_custom_call.1} parent=1 // pred_fallthru
      _
    %v50 = vld [vmem:[#allocation7] sm:$0xff]
    %v51 = vld [vmem:[#allocation7 + $0x8] sm:$0xff]
    %v52 = vld [vmem:[#allocation2] sm:$0xf]
    %v53 = vld [vmem:[#allocation2 + $0x4] sm:$0xf]
    %v54 = vld [vmem:[#allocation5] sm:$0xf]
    %v55 = vld [vmem:[#allocation5 + $0x4] sm:$0xf]
    %v56 = vld [vmem:[#allocation5 + $0x8] sm:$0xf]
    %v57 = vld [vmem:[#allocation5 + $0xc] sm:$0xf]
    %v58 = vld [vmem:[#allocation5 + $0x10] sm:$0xf]
    %v59 = vld [vmem:[#allocation5 + $0x14] sm:$0xf]
    %v60 = vld [vmem:[#allocation5 + $0x18] sm:$0xf]
    %v61 = vld [vmem:[#allocation5 + $0x1c] sm:$0xf]
    %v62 = vld [vmem:[#allocation5 + $0x20] sm:$0xf]
    %v63 = vld [vmem:[#allocation5 + $0x24] sm:$0xf]
    %v64 = vld [vmem:[#allocation5 + $0x28] sm:$0xf]
    %v65 = vld [vmem:[#allocation5 + $0x2c] sm:$0xf]
    %v66 = vld [vmem:[#allocation5 + $0x30] sm:$0xf]
    %v67 = vld [vmem:[#allocation5 + $0x34] sm:$0xf]
    %v68 = vld [vmem:[#allocation5 + $0x38] sm:$0xf]
    %v69 = vld [vmem:[#allocation5 + $0x3c] sm:$0xf]
    %v72 = vunpack.c.l.b16 %v52
    %v73 = vunpack.c.l.b16 %v53
    %v74 = vpack.c.b16 %v73, %v72
    %v92 = vunpack.c.l.b16 %v54
    %v93 = vunpack.c.l.b16 %v55
    %v94 = vunpack.c.l.b16 %v56
    %v95 = vunpack.c.l.b16 %v57
    %v96 = vunpack.c.l.b16 %v58
    %v97 = vunpack.c.l.b16 %v59
    %v98 = vunpack.c.l.b16 %v60
    %v99 = vunpack.c.l.b16 %v61
    %v100 = vunpack.c.l.b16 %v62
    %v101 = vunpack.c.l.b16 %v63
    %v102 = vunpack.c.l.b16 %v64
    %v103 = vunpack.c.l.b16 %v65
    %v104 = vunpack.c.l.b16 %v66
    %v105 = vunpack.c.l.b16 %v67
    %v106 = vunpack.c.l.b16 %v68
    %v107 = vunpack.c.l.b16 %v69
    %v108 = vpack.c.b16 %v93, %v92
    %v109 = vpack.c.b16 %v95, %v94
    %v110 = vpack.c.b16 %v97, %v96
    %v111 = vpack.c.b16 %v99, %v98
    %v112 = vpack.c.b16 %v101, %v100
    %v113 = vpack.c.b16 %v103, %v102
    %v114 = vpack.c.b16 %v105, %v104
    %v115 = vpack.c.b16 %v107, %v106
    %124 = vmatprep.subr.bf16.mxu0 0
    %125 = vmatpush1.bf16.msra.mxu0 %v115
    %126 = vmatprep.subr.bf16.mxu0 0
    %127 = vmatpush1.bf16.msra.mxu0 %v114
    %128 = vmatprep.subr.bf16.mxu0 0
    %129 = vmatpush1.bf16.msra.mxu0 %v113
    %130 = vmatprep.subr.bf16.mxu0 0
    %131 = vmatpush1.bf16.msra.mxu0 %v112
    %132 = vmatprep.subr.bf16.mxu0 0
    %133 = vmatpush1.bf16.msra.mxu0 %v111
    %134 = vmatprep.subr.bf16.mxu0 0
    %135 = vmatpush1.bf16.msra.mxu0 %v110
    %136 = vmatprep.subr.bf16.mxu0 0
    %137 = vmatpush1.bf16.msra.mxu0 %v109
    %138 = vmatprep.subr.bf16.mxu0 0
    %139 = vmatpush1.bf16.msra.mxu0 %v108
    %140 = vmatprep.subr.bf16.mxu0 0
    %141 = vmatpush2.bf16.msra.mxu0 0
    %142 = vmatprep.subr.bf16.mxu0 0
    %143 = vmatpush2.bf16.msra.mxu0 0
    %144 = vmatprep.subr.bf16.mxu0 0
    %145 = vmatpush2.bf16.msra.mxu0 0
    %146 = vmatprep.subr.bf16.mxu0 0
    %147 = vmatpush2.bf16.msra.mxu0 0
    %148 = vmatprep.subr.bf16.mxu0 0
    %149 = vmatpush2.bf16.msra.mxu0 0
    %150 = vmatprep.subr.bf16.mxu0 0
    %151 = vmatpush2.bf16.msra.mxu0 0
    %152 = vmatprep.subr.bf16.mxu0 0
    %153 = vmatpush2.bf16.msra.mxu0 0
    %154 = vmatprep.subr.bf16.mxu0 0
    %155 = vmatpush2.bf16.msra.mxu0 0
    %156 = vmatprep.mubr.bf16.mxu0 0
    %157 = vmatmul.mubr.bf16.gmra.mxu0 %v74
    %v158 = vpop.f32.mrf.mxu0
    %v159 = vadd.f32 0.0, %v158
    %v160 = vpop.f32.mrf.mxu0
    %v161 = vpop.f32.mrf.mxu0
    %v162 = vadd.f32 0.0, %v161
    %v163 = vpop.f32.mrf.mxu0
    %164 = vdwg.mxu0
    %v165 = vadd.f32 %v50, %v159
    %v166 = vadd.f32 %v51, %v162
    %167 = vst [vmem:[#allocation7] sm:$0xff] %v165
    %168 = vst [vmem:[#allocation7 + $0x8] sm:$0xff] %v166
    // Predicated region
    $region26: #{tpu_custom_call.1} parent=1 // pred_check
      %p169 = pneg %p44
    $region27: #{tpu_custom_call.1} parent=1 // pred_check_branch
      %171 = sbr.rel (%p169) target = $region29
    $region28: #{tpu_custom_call.1} parent=1 // pred_region
      %v172 = vld [vmem:[#allocation7] sm:$0xff]
      %v173 = vld [vmem:[#allocation7 + $0x8] sm:$0xff]
      %v174 = vld [vmem:[%s2] sm:$0x1]
      %v176 = vlaneseq
      %v177 = vshrl.u32 %v176, 7
      %v178 = vsub.s32 0, %v177
      %v179 = vrot.slane %v174, %v178
      %v181 = vadd.f32 %v172, %v179
      %v182 = vadd.f32 %v173, %v179
      %v183 = vmax.f32 %v181, 0.0
      %v184 = vmax.f32 %v182, 0.0
      %185 = vst [vmem:[#allocation7] sm:$0xff] %v183
      %186 = vst [vmem:[#allocation7 + $0x8] sm:$0xff] %v184
    $region29: #{tpu_custom_call.1} parent=1 // pred_fallthru
      _
    // Predicated region
    $region30: #{tpu_custom_call.1} parent=1 // pred_check
      _
    $region31: #{tpu_custom_call.1} parent=1 // pred_check_branch
      %188 = sbr.rel (0) target = $region33
    $region32: #{tpu_custom_call.1} parent=1 // pred_region
      %s190 = ssub.s32 256, 256
      %191 = vsyncadd [#allocation4], %s190
      %s192 = sshll.u32 [#allocation7], 4
      %s193 = int_to_ptr.vmem [resolvable:$true] %s192
      %198 = dma.vmem_to_hbm [thread:$0]  %s193, 256, %s3, [#allocation4], 128, 128, 8
    $region33: #{tpu_custom_call.1} parent=1 // pred_fallthru
      _
    // Predicated region
    $region34: #{tpu_custom_call.1} parent=1 // pred_check
      _
    $region35: #{tpu_custom_call.1} parent=1 // pred_check_branch
      %200 = sbr.rel (0) target = $region37
    $region36: #{tpu_custom_call.1} parent=1 // pred_region
      %201 = dma.done [#allocation4], 256
    $region37: #{tpu_custom_call.1} parent=1 // pred_fallthru
      _
    %202 = vsyncpa [#allocation3], 1
    %203 = vsyncpa [#allocation6], 1
    %204 = vsyncpa [#allocation4], 1

</llo_original>
